<compile_context>
chip_gen: v7x
topology: tpu7x:2x2x1
jax: 0.10.0
libtpu: 0.0.40
codegen_flags: <defaults>
</compile_context>

<pallas_src>
import functools

import jax
import jax.numpy as jnp
from jax.experimental import pallas as pl
from jax.experimental.pallas import tpu as pltpu


def _discriminator_kernel(x_ref, w1_ref, b1_ref, w2_ref, b2_ref, w3_ref, b3_ref,
                          o_ref):
    """Fused 3-layer MLP: (Linear+LeakyReLU) x2 then Linear+ScaledSigmoid."""
    x = x_ref[...].astype(jnp.float32)
    x_dim = x.shape[1]

    # --- Layer 1 on the VPU (K = x_dim = 2 would waste a full MXU pass) ------
    w1 = w1_ref[...].astype(jnp.float32)
    h1 = x[:, 0:1] * w1[0:1, :]
    for d in range(1, x_dim):            # unrolled at trace time (x_dim static)
        h1 = h1 + x[:, d:d + 1] * w1[d:d + 1, :]
    h1 = h1 + b1_ref[...].astype(jnp.float32)
    h1 = jnp.where(h1 > 0, h1, 0.2 * h1)

    # --- Layer 2: MXU matmul, f32 accumulation --------------------------------
    h2 = jnp.dot(h1.astype(w2_ref.dtype), w2_ref[...],
                 preferred_element_type=jnp.float32)
    h2 = h2 + b2_ref[...].astype(jnp.float32)
    h2 = jnp.where(h2 > 0, h2, 0.2 * h2)

    # --- Layer 3: MXU matmul into the compact (tile_b, e_dim) output ----------
    z = jnp.dot(h2.astype(w3_ref.dtype), w3_ref[...],
                preferred_element_type=jnp.float32)
    z = z + b3_ref[...].astype(jnp.float32)

    # ScaledSigmoid: 5*sigmoid(z) - 2.5. Stable tanh form, EUP transcendental,
    # accurate in f32 (no approx reciprocal, no exp overflow).
    sig = 0.5 * (jnp.tanh(0.5 * z) + 1.0)
    o_ref[...] = (5.0 * sig - 2.5).astype(o_ref.dtype)


def _round_up(n, m):
    return ((n + m - 1) // m) * m


def prepare_params(params, compute_dtype=jnp.bfloat16):
    """One-time weight prep hoisted out of the per-call forward path.

    w1 and all biases stay f32 (VPU / bias-add path); w2/w3 are stored in the
    MXU compute dtype so the forward does zero per-call casts or pads.
    """
    return {
        "w1": params["w1"].astype(jnp.float32),
        "b1": params["b1"].reshape(1, -1).astype(jnp.float32),
        "w2": params["w2"].astype(compute_dtype),
        "b2": params["b2"].reshape(1, -1).astype(jnp.float32),
        "w3": params["w3"].astype(compute_dtype),
        "b3": params["b3"].reshape(1, -1).astype(jnp.float32),
    }


@functools.partial(jax.jit, static_argnames=("max_tile_b",))
def discriminator_forward(x, params, max_tile_b=1024):
    """x: [B, x_dim] float32. params: output of prepare_params()."""
    B, x_dim = x.shape
    h1_dim = params["w1"].shape[1]
    h2_dim = params["w2"].shape[1]
    e_dim = params["w3"].shape[1]

    # Large B: big tiles (amortize ~0.35us/step overhead, near HBM roofline).
    # Small B: two balanced steps so both v7x TensorCores get real work.
    tile_b = min(max_tile_b, max(8, _round_up(-(-B // 2), 8)))
    n_tiles = pl.cdiv(B, tile_b)
    b_pad = n_tiles * tile_b

    x_p = x.astype(jnp.float32)
    if b_pad != B:
        x_p = jnp.pad(x_p, ((0, b_pad - B), (0, 0)))  # padded rows sliced off below

    full = lambda shape: pl.BlockSpec(shape, lambda i: (0, 0))  # resident weights

    out = pl.pallas_call(
        _discriminator_kernel,
        out_shape=jax.ShapeDtypeStruct((b_pad, e_dim), jnp.float32),
        grid_spec=pltpu.PrefetchScalarGridSpec(
            num_scalar_prefetch=0,
            grid=(n_tiles,),
            in_specs=[
                pl.BlockSpec((tile_b, x_dim), lambda i: (i, 0)),  # x tile
                full((x_dim, h1_dim)),   # w1
                full((1, h1_dim)),       # b1
                full((h1_dim, h2_dim)),  # w2
                full((1, h2_dim)),       # b2
                full((h2_dim, e_dim)),   # w3 (compact, no lane padding)
                full((1, e_dim)),        # b3
            ],
            out_specs=pl.BlockSpec((tile_b, e_dim), lambda i: (i, 0)),
        ),
        compiler_params=pltpu.CompilerParams(
            dimension_semantics=("parallel",)),
    )(x_p, params["w1"], params["b1"], params["w2"], params["b2"],
      params["w3"], params["b3"])

    if b_pad != B:
        out = out[:B]
    return out


def init_discriminator_params(key, e_dim=32, layers_dim=(128, 128), x_dim=2):
    """Init matching the module: weights ~ N(0, 0.02), PyTorch-default biases.
    Weights stored transposed: [in_dim, out_dim]."""
    dims = [x_dim, *list(layers_dim), e_dim]
    params = {}
    for idx in range(len(dims) - 1):
        key, kw, kb = jax.random.split(key, 3)
        fan_in, fan_out = dims[idx], dims[idx + 1]
        w = 0.02 * jax.random.normal(kw, (fan_in, fan_out), dtype=jnp.float32)
        bound = 1.0 / jnp.sqrt(jnp.float32(fan_in))
        b = jax.random.uniform(kb, (1, fan_out), dtype=jnp.float32,
                               minval=-bound, maxval=bound)
        params[f"w{idx + 1}"] = w
        params[f"b{idx + 1}"] = b
    return params


def _reference_forward(x, params):
    """Plain-JAX f32 reference mirroring the PyTorch module semantics."""
    h = x @ params["w1"] + params["b1"]
    h = jnp.where(h > 0, h, 0.2 * h)
    h = h @ params["w2"] + params["b2"]
    h = jnp.where(h > 0, h, 0.2 * h)
    z = h @ params["w3"] + params["b3"]
    return 5.0 * jax.nn.sigmoid(z) - 2.5


if __name__ == "__main__":
    key = jax.random.PRNGKey(0)
    k_params, k_x = jax.random.split(key)

    e_dim = 32
    x_dim = 2
    batch = 300          # not a multiple of the tile -> exercises padding path

    raw_params = init_discriminator_params(k_params, e_dim=e_dim,
                                           layers_dim=(128, 128), x_dim=x_dim)
    x = jax.random.normal(k_x, (batch, x_dim), dtype=jnp.float32)

    ref = _reference_forward(x, raw_params)

    # bf16 MXU path (default, v6e/v7x-friendly). Weight prep done once, outside jit.
    params_bf16 = prepare_params(raw_params, jnp.bfloat16)
    out_bf16 = jax.block_until_ready(discriminator_forward(x, params_bf16))
    assert out_bf16.shape == (batch, e_dim)
    assert jnp.allclose(out_bf16, ref, atol=3e-2, rtol=3e-2)

    # f32 MXU path (strict accuracy / v5e-style usage). Exact sigmoid math.
    params_f32 = prepare_params(raw_params, jnp.float32)
    out_f32 = jax.block_until_ready(discriminator_forward(x, params_f32))
    assert out_f32.shape == (batch, e_dim)
    assert jnp.allclose(out_f32, ref, atol=5e-3, rtol=5e-3)

    print("KERNEL_OK")
</pallas_src>

<mosaic_0001>
module attributes {stable_mosaic.version = 11 : i64} {
  func.func @_discriminator_kernel(%arg0: i32, %arg1: memref<152x2xf32, #tpu.memory_space<vmem>>, %arg2: memref<2x128xf32, #tpu.memory_space<vmem>>, %arg3: memref<1x128xf32, #tpu.memory_space<vmem>>, %arg4: memref<128x128xbf16, #tpu.memory_space<vmem>>, %arg5: memref<1x128xf32, #tpu.memory_space<vmem>>, %arg6: memref<128x32xbf16, #tpu.memory_space<vmem>>, %arg7: memref<1x32xf32, #tpu.memory_space<vmem>>, %arg8: memref<152x32xf32, #tpu.memory_space<vmem>>) attributes {dimension_semantics = [#tpu.dimension_semantics<parallel>], iteration_bounds = array<i64: 2>, scalar_prefetch = 0 : i64, scratch_operands = 0 : i64, tpu.core_type = #tpu.core_type<tc>, window_params = [{transform_indices = @transform_0, window_bounds = array<i64: 152, 2>}, {pipeline_mode = #tpu.pipeline_mode<synchronous>, transform_indices = @transform_1, window_bounds = array<i64: 2, 128>}, {pipeline_mode = #tpu.pipeline_mode<synchronous>, transform_indices = @transform_2, window_bounds = array<i64: 1, 128>}, {pipeline_mode = #tpu.pipeline_mode<synchronous>, transform_indices = @transform_3, window_bounds = array<i64: 128, 128>}, {pipeline_mode = #tpu.pipeline_mode<synchronous>, transform_indices = @transform_4, window_bounds = array<i64: 1, 128>}, {pipeline_mode = #tpu.pipeline_mode<synchronous>, transform_indices = @transform_5, window_bounds = array<i64: 128, 32>}, {pipeline_mode = #tpu.pipeline_mode<synchronous>, transform_indices = @transform_6, window_bounds = array<i64: 1, 32>}, {transform_indices = @transform_7, window_bounds = array<i64: 152, 32>}]} {
    %c0 = arith.constant 0 : index
    %c0_0 = arith.constant 0 : index
    %0 = vector.load %arg1[%c0, %c0_0] : memref<152x2xf32, #tpu.memory_space<vmem>>, vector<152x2xf32>
    %c0_1 = arith.constant 0 : index
    %c0_2 = arith.constant 0 : index
    %1 = vector.load %arg2[%c0_1, %c0_2] : memref<2x128xf32, #tpu.memory_space<vmem>>, vector<2x128xf32>
    %2 = vector.extract_strided_slice %0 {offsets = [0, 0], sizes = [152, 1], strides = [1, 1]} : vector<152x2xf32> to vector<152x1xf32>
    %3 = vector.extract_strided_slice %1 {offsets = [0, 0], sizes = [1, 128], strides = [1, 1]} : vector<2x128xf32> to vector<1x128xf32>
    %4 = vector.broadcast %2 : vector<152x1xf32> to vector<152x128xf32>
    %5 = vector.broadcast %3 : vector<1x128xf32> to vector<152x128xf32>
    %6 = arith.mulf %4, %5 : vector<152x128xf32>
    %7 = vector.extract_strided_slice %0 {offsets = [0, 1], sizes = [152, 1], strides = [1, 1]} : vector<152x2xf32> to vector<152x1xf32>
    %8 = vector.extract_strided_slice %1 {offsets = [1, 0], sizes = [1, 128], strides = [1, 1]} : vector<2x128xf32> to vector<1x128xf32>
    %9 = vector.broadcast %7 : vector<152x1xf32> to vector<152x128xf32>
    %10 = vector.broadcast %8 : vector<1x128xf32> to vector<152x128xf32>
    %11 = arith.mulf %9, %10 : vector<152x128xf32>
    %12 = arith.addf %6, %11 : vector<152x128xf32>
    %c0_3 = arith.constant 0 : index
    %c0_4 = arith.constant 0 : index
    %13 = vector.load %arg3[%c0_3, %c0_4] : memref<1x128xf32, #tpu.memory_space<vmem>>, vector<1x128xf32>
    %14 = vector.broadcast %13 : vector<1x128xf32> to vector<152x128xf32>
    %15 = arith.addf %12, %14 : vector<152x128xf32>
    %cst = arith.constant 0.000000e+00 : f32
    %16 = vector.broadcast %cst : f32 to vector<152x128xf32>
    %17 = arith.cmpf ogt, %15, %16 : vector<152x128xf32>
    %cst_5 = arith.constant 2.000000e-01 : f32
    %18 = vector.broadcast %cst_5 : f32 to vector<152x128xf32>
    %19 = arith.mulf %18, %15 : vector<152x128xf32>
    %20 = arith.select %17, %15, %19 : vector<152x128xi1>, vector<152x128xf32>
    %21 = arith.truncf %20 : vector<152x128xf32> to vector<152x128xbf16>
    %c0_6 = arith.constant 0 : index
    %c0_7 = arith.constant 0 : index
    %22 = vector.load %arg4[%c0_6, %c0_7] : memref<128x128xbf16, #tpu.memory_space<vmem>>, vector<128x128xbf16>
    %cst_8 = arith.constant dense<0.000000e+00> : vector<152x128xf32>
    %23 = tpu.matmul %21, %22, %cst_8 {dimension_numbers = #tpu.dot_dimension_numbers<[1], [0], [0], [1], [0, 0, 1, 1], [], []>} : vector<152x128xbf16>, vector<128x128xbf16>, vector<152x128xf32> -> vector<152x128xf32>
    %c0_9 = arith.constant 0 : index
    %c0_10 = arith.constant 0 : index
    %24 = vector.load %arg5[%c0_9, %c0_10] : memref<1x128xf32, #tpu.memory_space<vmem>>, vector<1x128xf32>
    %25 = vector.broadcast %24 : vector<1x128xf32> to vector<152x128xf32>
    %26 = arith.addf %23, %25 : vector<152x128xf32>
    %cst_11 = arith.constant 0.000000e+00 : f32
    %27 = vector.broadcast %cst_11 : f32 to vector<152x128xf32>
    %28 = arith.cmpf ogt, %26, %27 : vector<152x128xf32>
    %cst_12 = arith.constant 2.000000e-01 : f32
    %29 = vector.broadcast %cst_12 : f32 to vector<152x128xf32>
    %30 = arith.mulf %29, %26 : vector<152x128xf32>
    %31 = arith.select %28, %26, %30 : vector<152x128xi1>, vector<152x128xf32>
    %32 = arith.truncf %31 : vector<152x128xf32> to vector<152x128xbf16>
    %c0_13 = arith.constant 0 : index
    %c0_14 = arith.constant 0 : index
    %33 = vector.load %arg6[%c0_13, %c0_14] : memref<128x32xbf16, #tpu.memory_space<vmem>>, vector<128x32xbf16>
    %cst_15 = arith.constant dense<0.000000e+00> : vector<152x32xf32>
    %34 = tpu.matmul %32, %33, %cst_15 {dimension_numbers = #tpu.dot_dimension_numbers<[1], [0], [0], [1], [0, 0, 1, 1], [], []>} : vector<152x128xbf16>, vector<128x32xbf16>, vector<152x32xf32> -> vector<152x32xf32>
    %c0_16 = arith.constant 0 : index
    %c0_17 = arith.constant 0 : index
    %35 = vector.load %arg7[%c0_16, %c0_17] : memref<1x32xf32, #tpu.memory_space<vmem>>, vector<1x32xf32>
    %36 = vector.broadcast %35 : vector<1x32xf32> to vector<152x32xf32>
    %37 = arith.addf %34, %36 : vector<152x32xf32>
    %cst_18 = arith.constant 5.000000e-01 : f32
    %38 = vector.broadcast %cst_18 : f32 to vector<152x32xf32>
    %39 = arith.mulf %38, %37 : vector<152x32xf32>
    %40 = math.tanh %39 : vector<152x32xf32>
    %cst_19 = arith.constant 1.000000e+00 : f32
    %41 = vector.broadcast %cst_19 : f32 to vector<152x32xf32>
    %42 = arith.addf %40, %41 : vector<152x32xf32>
    %cst_20 = arith.constant 5.000000e-01 : f32
    %43 = vector.broadcast %cst_20 : f32 to vector<152x32xf32>
    %44 = arith.mulf %43, %42 : vector<152x32xf32>
    %cst_21 = arith.constant 5.000000e+00 : f32
    %45 = vector.broadcast %cst_21 : f32 to vector<152x32xf32>
    %46 = arith.mulf %45, %44 : vector<152x32xf32>
    %cst_22 = arith.constant 2.500000e+00 : f32
    %47 = vector.broadcast %cst_22 : f32 to vector<152x32xf32>
    %48 = arith.subf %46, %47 : vector<152x32xf32>
    %c0_23 = arith.constant 0 : index
    %c0_24 = arith.constant 0 : index
    %49 = vector.load %arg8[%c0_23, %c0_24] : memref<152x32xf32, #tpu.memory_space<vmem>>, vector<152x32xf32>
    tpu.vector_store %arg8[%c0_23, %c0_24], %48 {strides = array<i32>} : memref<152x32xf32, #tpu.memory_space<vmem>>, vector<152x32xf32>,
    return
  }
  func.func @transform_0(%arg0: i32) -> (i32, i32) {
    %c0_i32 = arith.constant 0 : i32
    %c0_i32_0 = arith.constant 0 : i32
    return %arg0, %c0_i32 : i32, i32
  }
  func.func @transform_1(%arg0: i32) -> (i32, i32) {
    %c0_i32 = arith.constant 0 : i32
    %c0_i32_0 = arith.constant 0 : i32
    %c0_i32_1 = arith.constant 0 : i32
    return %c0_i32, %c0_i32_0 : i32, i32
  }
  func.func @transform_2(%arg0: i32) -> (i32, i32) {
    %c0_i32 = arith.constant 0 : i32
    %c0_i32_0 = arith.constant 0 : i32
    %c0_i32_1 = arith.constant 0 : i32
    return %c0_i32, %c0_i32_0 : i32, i32
  }
  func.func @transform_3(%arg0: i32) -> (i32, i32) {
    %c0_i32 = arith.constant 0 : i32
    %c0_i32_0 = arith.constant 0 : i32
    %c0_i32_1 = arith.constant 0 : i32
    return %c0_i32, %c0_i32_0 : i32, i32
  }
  func.func @transform_4(%arg0: i32) -> (i32, i32) {
    %c0_i32 = arith.constant 0 : i32
    %c0_i32_0 = arith.constant 0 : i32
    %c0_i32_1 = arith.constant 0 : i32
    return %c0_i32, %c0_i32_0 : i32, i32
  }
  func.func @transform_5(%arg0: i32) -> (i32, i32) {
    %c0_i32 = arith.constant 0 : i32
    %c0_i32_0 = arith.constant 0 : i32
    %c0_i32_1 = arith.constant 0 : i32
    return %c0_i32, %c0_i32_0 : i32, i32
  }
  func.func @transform_6(%arg0: i32) -> (i32, i32) {
    %c0_i32 = arith.constant 0 : i32
    %c0_i32_0 = arith.constant 0 : i32
    %c0_i32_1 = arith.constant 0 : i32
    return %c0_i32, %c0_i32_0 : i32, i32
  }
  func.func @transform_7(%arg0: i32) -> (i32, i32) {
    %c0_i32 = arith.constant 0 : i32
    %c0_i32_0 = arith.constant 0 : i32
    return %arg0, %c0_i32 : i32, i32
  }
}

</mosaic_0001>

<llo_original>
// kernel: discriminator_forward.1
$region0: #{discriminator_forward.1}
  #allocation0 [shape = 'u32[]', space=smem, size = 0x4, offset = 0x4, fixed_abs, tag = 'smem constant byte address 0x4 - core index']
  #allocation1 [shape = 'u32[144,128]{1,0:T(1,128)}', space=vmem, size = 0x12000, scoped, tag = 'internal scratch']
  %s0 = inlined_call_operand.vmem [shape: f32[304,2], index: 0, kind: input, shape index: {}]
  %s1 = inlined_call_operand.vmem [shape: f32[2,128], index: 1, kind: input, shape index: {}]
  %s2 = inlined_call_operand.vmem [shape: f32[1,128], index: 2, kind: input, shape index: {}]
  %s3 = inlined_call_operand.vmem [shape: bf16[128,128], index: 3, kind: input, shape index: {}]
  %s4 = inlined_call_operand.vmem [shape: f32[1,128], index: 4, kind: input, shape index: {}]
  %s5 = inlined_call_operand.vmem [shape: bf16[128,32], index: 5, kind: input, shape index: {}]
  %s6 = inlined_call_operand.vmem [shape: f32[1,32], index: 6, kind: input, shape index: {}]
  %s7 = inlined_call_operand.vmem [shape: f32[304,32], index: 7, kind: output, shape index: {}]
  %s8 = sld [smem:[#allocation0]]
  $region61: #{discriminator_forward.1} parent=0
    _
  %s10 = ssub.s32 1, %s8
  %s11 = scalar_select 0, %s10, %s8
  loop: start=0, step=1, limit=4
  $region2: #{discriminator_forward.1} parent=0 // loop_pre_header
    _
  $region3: #{discriminator_forward.1} parent=0 // loop_header
    %s13 = sphi 0, %s17
    %p14 = scmp.ge.s32.totalorder %s13, 4
    %s23 = sphi 0, %s25
    %s26 = sphi 0, %s23
    %s27 = sphi 0, %s26
    %s43 = sphi 0, %s27
    %s47 = sphi 0, %s47
    %s49 = sphi 0, %s47
    %s50 = sphi 0, %s49
    %s64 = sphi 0, %s50
    %s68 = sphi 0, %s68
    %s70 = sphi 0, %s68
    %s71 = sphi 0, %s70
    %s85 = sphi 0, %s71
    %s89 = sphi 0, %s89
    %s91 = sphi 0, %s89
    %s92 = sphi 0, %s91
    %s106 = sphi 0, %s92
    %s110 = sphi 0, %s110
    %s112 = sphi 0, %s110
    %s113 = sphi 0, %s112
    %s127 = sphi 0, %s113
    %s131 = sphi 0, %s131
    %s133 = sphi 0, %s131
    %s134 = sphi 0, %s133
    %s148 = sphi 0, %s134
    %s152 = sphi 0, %s152
    %s154 = sphi 0, %s152
    %s155 = sphi 0, %s154
    %s169 = sphi 0, %s155
    %s175 = sphi 0, %s177
    %s178 = sphi 0, %s175
    %s179 = sphi 0, %s178
    %s195 = sphi 0, %s179
  $region4: #{discriminator_forward.1} parent=0 // loop_header_branch
    %16 = sbr.rel (%p14) target = $region8
  $region5: #{discriminator_forward.1} parent=0 // loop_body
    %s18 = ssub.s32 %s13, 1
    %s19 = ssub.s32 %s13, 2
    %s20 = sadd.s32 %s13, 1
    %s21 = ssub.s32 %s13, %s20
    %p22 = scmp.eq.s32.totalorder %s21, 0
    %s24 = sadd.s32 %s23, 1
    %s25 = scalar_select %p22, %s23, %s24
    %p28 = pneg %p22
    %p29 = scmp.eq.s32.totalorder %s13, 1
    %p30 = por %p28, %p29
    %p31 = scmp.ne.s32.totalorder %s23, %s26
    %p32 = scmp.eq.s32.totalorder %s13, 0
    %p33 = por %p31, %p32
    %p34 = scmp.ne.s32.totalorder %s23, %s26
    %p35 = scmp.eq.s32.totalorder %s18, 1
    %p36 = por %p34, %p35
    %p37 = scmp.ne.s32.totalorder %s26, %s27
    %p38 = scmp.eq.s32.totalorder %s18, 0
    %p39 = por %p37, %p38
    %p40 = scmp.ne.s32.totalorder %s26, %s27
    %p41 = scmp.eq.s32.totalorder %s19, 1
    %p42 = por %p40, %p41
    %p44 = scmp.ne.s32.totalorder %s27, %s43
    %p45 = scmp.eq.s32.totalorder %s19, 0
    %p46 = por %p44, %p45
    %s48 = sadd.s32 %s47, 1
    %p51 = scmp.eq.s32.totalorder %s13, 1
    %p52 = scmp.ne.s32.totalorder %s47, %s49
    %p53 = scmp.eq.s32.totalorder %s13, 0
    %p54 = por %p52, %p53
    %p55 = scmp.ne.s32.totalorder %s47, %s49
    %p56 = scmp.eq.s32.totalorder %s18, 1
    %p57 = por %p55, %p56
    %p58 = scmp.ne.s32.totalorder %s49, %s50
    %p59 = scmp.eq.s32.totalorder %s18, 0
    %p60 = por %p58, %p59
    %p61 = scmp.ne.s32.totalorder %s49, %s50
    %p62 = scmp.eq.s32.totalorder %s19, 1
    %p63 = por %p61, %p62
    %p65 = scmp.ne.s32.totalorder %s50, %s64
    %p66 = scmp.eq.s32.totalorder %s19, 0
    %p67 = por %p65, %p66
    %s69 = sadd.s32 %s68, 1
    %p72 = scmp.eq.s32.totalorder %s13, 1
    %p73 = scmp.ne.s32.totalorder %s68, %s70
    %p74 = scmp.eq.s32.totalorder %s13, 0
    %p75 = por %p73, %p74
    %p76 = scmp.ne.s32.totalorder %s68, %s70
    %p77 = scmp.eq.s32.totalorder %s18, 1
    %p78 = por %p76, %p77
    %p79 = scmp.ne.s32.totalorder %s70, %s71
    %p80 = scmp.eq.s32.totalorder %s18, 0
    %p81 = por %p79, %p80
    %p82 = scmp.ne.s32.totalorder %s70, %s71
    %p83 = scmp.eq.s32.totalorder %s19, 1
    %p84 = por %p82, %p83
    %p86 = scmp.ne.s32.totalorder %s71, %s85
    %p87 = scmp.eq.s32.totalorder %s19, 0
    %p88 = por %p86, %p87
    %s90 = sadd.s32 %s89, 1
    %p93 = scmp.eq.s32.totalorder %s13, 1
    %p94 = scmp.ne.s32.totalorder %s89, %s91
    %p95 = scmp.eq.s32.totalorder %s13, 0
    %p96 = por %p94, %p95
    %p97 = scmp.ne.s32.totalorder %s89, %s91
    %p98 = scmp.eq.s32.totalorder %s18, 1
    %p99 = por %p97, %p98
    %p100 = scmp.ne.s32.totalorder %s91, %s92
    %p101 = scmp.eq.s32.totalorder %s18, 0
    %p102 = por %p100, %p101
    %p103 = scmp.ne.s32.totalorder %s91, %s92
    %p104 = scmp.eq.s32.totalorder %s19, 1
    %p105 = por %p103, %p104
    %p107 = scmp.ne.s32.totalorder %s92, %s106
    %p108 = scmp.eq.s32.totalorder %s19, 0
    %p109 = por %p107, %p108
    %s111 = sadd.s32 %s110, 1
    %p114 = scmp.eq.s32.totalorder %s13, 1
    %p115 = scmp.ne.s32.totalorder %s110, %s112
    %p116 = scmp.eq.s32.totalorder %s13, 0
    %p117 = por %p115, %p116
    %p118 = scmp.ne.s32.totalorder %s110, %s112
    %p119 = scmp.eq.s32.totalorder %s18, 1
    %p120 = por %p118, %p119
    %p121 = scmp.ne.s32.totalorder %s112, %s113
    %p122 = scmp.eq.s32.totalorder %s18, 0
    %p123 = por %p121, %p122
    %p124 = scmp.ne.s32.totalorder %s112, %s113
    %p125 = scmp.eq.s32.totalorder %s19, 1
    %p126 = por %p124, %p125
    %p128 = scmp.ne.s32.totalorder %s113, %s127
    %p129 = scmp.eq.s32.totalorder %s19, 0
    %p130 = por %p128, %p129
    %s132 = sadd.s32 %s131, 1
    %p135 = scmp.eq.s32.totalorder %s13, 1
    %p136 = scmp.ne.s32.totalorder %s131, %s133
    %p137 = scmp.eq.s32.totalorder %s13, 0
    %p138 = por %p136, %p137
    %p139 = scmp.ne.s32.totalorder %s131, %s133
    %p140 = scmp.eq.s32.totalorder %s18, 1
    %p141 = por %p139, %p140
    %p142 = scmp.ne.s32.totalorder %s133, %s134
    %p143 = scmp.eq.s32.totalorder %s18, 0
    %p144 = por %p142, %p143
    %p145 = scmp.ne.s32.totalorder %s133, %s134
    %p146 = scmp.eq.s32.totalorder %s19, 1
    %p147 = por %p145, %p146
    %p149 = scmp.ne.s32.totalorder %s134, %s148
    %p150 = scmp.eq.s32.totalorder %s19, 0
    %p151 = por %p149, %p150
    %s153 = sadd.s32 %s152, 1
    %p156 = scmp.eq.s32.totalorder %s13, 1
    %p157 = scmp.ne.s32.totalorder %s152, %s154
    %p158 = scmp.eq.s32.totalorder %s13, 0
    %p159 = por %p157, %p158
    %p160 = scmp.ne.s32.totalorder %s152, %s154
    %p161 = scmp.eq.s32.totalorder %s18, 1
    %p162 = por %p160, %p161
    %p163 = scmp.ne.s32.totalorder %s154, %s155
    %p164 = scmp.eq.s32.totalorder %s18, 0
    %p165 = por %p163, %p164
    %p166 = scmp.ne.s32.totalorder %s154, %s155
    %p167 = scmp.eq.s32.totalorder %s19, 1
    %p168 = por %p166, %p167
    %p170 = scmp.ne.s32.totalorder %s155, %s169
    %p171 = scmp.eq.s32.totalorder %s19, 0
    %p172 = por %p170, %p171
    %s173 = ssub.s32 %s13, %s20
    %p174 = scmp.eq.s32.totalorder %s173, 0
    %s176 = sadd.s32 %s175, 1
    %s177 = scalar_select %p174, %s175, %s176
    %p180 = pneg %p174
    %p181 = scmp.eq.s32.totalorder %s13, 1
    %p182 = por %p180, %p181
    %p183 = scmp.ne.s32.totalorder %s175, %s178
    %p184 = scmp.eq.s32.totalorder %s13, 0
    %p185 = por %p183, %p184
    %p186 = scmp.ne.s32.totalorder %s175, %s178
    %p187 = scmp.eq.s32.totalorder %s18, 1
    %p188 = por %p186, %p187
    %p189 = scmp.ne.s32.totalorder %s178, %s179
    %p190 = scmp.eq.s32.totalorder %s18, 0
    %p191 = por %p189, %p190
    %p192 = scmp.ne.s32.totalorder %s178, %s179
    %p193 = scmp.eq.s32.totalorder %s19, 1
    %p194 = por %p192, %p193
    %p196 = scmp.ne.s32.totalorder %s179, %s195
    %p197 = scmp.eq.s32.totalorder %s19, 0
    %p198 = por %p196, %p197
    %p199 = scmp.le.s32.totalorder 1, %s13
    %p200 = scmp.lt.s32.totalorder %s13, 3
    %p201 = pnand %p199, %p200
    %p202 = pneg %p201
    // Predicated region
    $region9: #{discriminator_forward.1} parent=5 // pred_check
      _
    $region10: #{discriminator_forward.1} parent=5 // pred_check_branch
      %204 = sbr.rel (%p201) target = $region12
    $region11: #{discriminator_forward.1} parent=5 // pred_region
      %s205 = ssub.s32 %s13, 1
      // Predicated region
      $region13: #{discriminator_forward.1} parent=11 // pred_check
        %p206 = pneg %p60
      $region14: #{discriminator_forward.1} parent=11 // pred_check_branch
        %208 = sbr.rel (%p206) target = $region16
      $region15: #{discriminator_forward.1} parent=11 // pred_region
        _
      $region16: #{discriminator_forward.1} parent=11 // pred_fallthru
        _
      // Predicated region
      $region17: #{discriminator_forward.1} parent=11 // pred_check
        %p209 = pneg %p81
      $region18: #{discriminator_forward.1} parent=11 // pred_check_branch
        %211 = sbr.rel (%p209) target = $region20
      $region19: #{discriminator_forward.1} parent=11 // pred_region
        _
      $region20: #{discriminator_forward.1} parent=11 // pred_fallthru
        _
      // Predicated region
      $region21: #{discriminator_forward.1} parent=11 // pred_check
        %p212 = pneg %p102
      $region22: #{discriminator_forward.1} parent=11 // pred_check_branch
        %214 = sbr.rel (%p212) target = $region24
      $region23: #{discriminator_forward.1} parent=11 // pred_region
        _
      $region24: #{discriminator_forward.1} parent=11 // pred_fallthru
        _
      // Predicated region
      $region25: #{discriminator_forward.1} parent=11 // pred_check
        %p215 = pneg %p123
      $region26: #{discriminator_forward.1} parent=11 // pred_check_branch
        %217 = sbr.rel (%p215) target = $region28
      $region27: #{discriminator_forward.1} parent=11 // pred_region
        _
      $region28: #{discriminator_forward.1} parent=11 // pred_fallthru
        _
      // Predicated region
      $region29: #{discriminator_forward.1} parent=11 // pred_check
        %p218 = pneg %p144
      $region30: #{discriminator_forward.1} parent=11 // pred_check_branch
        %220 = sbr.rel (%p218) target = $region32
      $region31: #{discriminator_forward.1} parent=11 // pred_region
        _
      $region32: #{discriminator_forward.1} parent=11 // pred_fallthru
        _
      // Predicated region
      $region33: #{discriminator_forward.1} parent=11 // pred_check
        %p221 = pneg %p165
      $region34: #{discriminator_forward.1} parent=11 // pred_check_branch
        %223 = sbr.rel (%p221) target = $region36
      $region35: #{discriminator_forward.1} parent=11 // pred_region
        _
      $region36: #{discriminator_forward.1} parent=11 // pred_fallthru
        _
    $region12: #{discriminator_forward.1} parent=5 // pred_fallthru
      _
    %p224 = scmp.lt.s32.totalorder %s13, 2
    // Predicated region
    $region37: #{discriminator_forward.1} parent=5 // pred_check
      %p225 = pneg %p224
    $region38: #{discriminator_forward.1} parent=5 // pred_check_branch
      %227 = sbr.rel (%p225) target = $region40
    $region39: #{discriminator_forward.1} parent=5 // pred_region
      // Predicated region
      $region41: #{discriminator_forward.1} parent=39 // pred_check
        %p228 = pneg %p33
      $region42: #{discriminator_forward.1} parent=39 // pred_check_branch
        %230 = sbr.rel (%p228) target = $region44
      $region43: #{discriminator_forward.1} parent=39 // pred_region
        %s231 = smul.u32 19, %s13
        %p232 = scmp.lt.s32.totalorder %s231, 37
        %s233 = scalar_select %p232, %s231, 37
        %s234 = smul.addr %s233, 8
        %s235 = scalar_lea.vmem %s0, %s234
        %s236 = smul.u32 19, %s13
      $region44: #{discriminator_forward.1} parent=39 // pred_fallthru
        _
    $region40: #{discriminator_forward.1} parent=5 // pred_fallthru
      _
    %p237 = scmp.le.s32.totalorder 1, %s13
    %p238 = scmp.lt.s32.totalorder %s13, 3
    %p239 = pnand %p237, %p238
    %p240 = pneg %p239
    // Predicated region
    $region45: #{discriminator_forward.1} parent=5 // pred_check
      _
    $region46: #{discriminator_forward.1} parent=5 // pred_check_branch
      %242 = sbr.rel (%p239) target = $region48
    $region47: #{discriminator_forward.1} parent=5 // pred_region
      %s243 = ssub.s32 %s13, 1
      %s244 = smul.u32 19, %s18
      %p245 = scmp.lt.s32.totalorder %s244, 37
      %s246 = scalar_select %p245, %s244, 37
      %s247 = smul.addr %s246, 8
      %s248 = scalar_lea.vmem %s0, %s247
      %p249 = pneg %p39
      %p250 = pneg %p36
      %p251 = pneg %p60
      %p252 = pneg %p57
      %p253 = pneg %p81
      %p254 = pneg %p78
      %p255 = pneg %p102
      %p256 = pneg %p99
      %p257 = pneg %p123
      %p258 = pneg %p120
      %p259 = pneg %p144
      %p260 = pneg %p141
      %p261 = pneg %p165
      %p262 = pneg %p162
      %p263 = pneg %p191
      %p264 = pneg %p188
      %s265 = smul.u32 19, %s18
      %p266 = scmp.lt.s32.totalorder %s265, 37
      %s267 = scalar_select %p266, %s265, 37
      %s268 = smul.addr %s267, 8
      %s269 = scalar_lea.vmem %s7, %s268
      %s270 = smul.u32 19, %s18
      %p271 = scmp.lt.s32.totalorder %s270, 37
      %s272 = scalar_select %p271, %s270, 37
      %s273 = smul.addr %s272, 8
      %s274 = scalar_lea.vmem %s0, %s273
      %s275 = smul.u32 19, %s18
      %s276 = smul.u32 19, %s18
      %p277 = scmp.lt.s32.totalorder %s276, 37
      %s278 = scalar_select %p277, %s276, 37
      %s279 = smul.addr %s278, 8
      %s280 = scalar_lea.vmem %s7, %s279
      %s281 = smul.u32 19, %s18
      %v283 = vld [vmem:[%s274] sm:$0xff]
      %v284 = vld [vmem:[%s274 + $0x8] sm:$0xff]
      %v285 = vld [vmem:[%s274 + $0x10] sm:$0xff]
      %v286 = vld [vmem:[%s274 + $0x18] sm:$0xff]
      %v287 = vld [vmem:[%s274 + $0x20] sm:$0xff]
      %v288 = vld [vmem:[%s274 + $0x28] sm:$0xff]
      %v289 = vld [vmem:[%s274 + $0x30] sm:$0xff]
      %v290 = vld [vmem:[%s274 + $0x38] sm:$0xff]
      %v291 = vld [vmem:[%s274 + $0x40] sm:$0xff]
      %v292 = vld [vmem:[%s274 + $0x48] sm:$0xff]
      %v293 = vld [vmem:[%s274 + $0x50] sm:$0xff]
      %v294 = vld [vmem:[%s274 + $0x58] sm:$0xff]
      %v295 = vld [vmem:[%s274 + $0x60] sm:$0xff]
      %v296 = vld [vmem:[%s274 + $0x68] sm:$0xff]
      %v297 = vld [vmem:[%s274 + $0x70] sm:$0xff]
      %v298 = vld [vmem:[%s274 + $0x78] sm:$0xff]
      %v299 = vld [vmem:[%s274 + $0x80] sm:$0xff]
      %v300 = vld [vmem:[%s274 + $0x88] sm:$0xff]
      %v301 = vld [vmem:[%s274 + $0x90] sm:$0xff]
      %v302 = vld [vmem:[%s1] sm:$0x3]
      %304 = vset.pattern.permute.xlu0 0
      %305 = vperm.xlu0 %304, %v283
      %v306 = vpop.permute.xlu0 %305
      %309 = vset.pattern.permute.xlu0 0
      %310 = vperm.xlu0 %309, %v284
      %v311 = vpop.permute.xlu0 %310
      %314 = vset.pattern.permute.xlu0 0
      %315 = vperm.xlu0 %314, %v285
      %v316 = vpop.permute.xlu0 %315
      %319 = vset.pattern.permute.xlu0 0
      %320 = vperm.xlu0 %319, %v286
      %v321 = vpop.permute.xlu0 %320
      %324 = vset.pattern.permute.xlu0 0
      %325 = vperm.xlu0 %324, %v287
      %v326 = vpop.permute.xlu0 %325
      %329 = vset.pattern.permute.xlu0 0
      %330 = vperm.xlu0 %329, %v288
      %v331 = vpop.permute.xlu0 %330
      %334 = vset.pattern.permute.xlu0 0
      %335 = vperm.xlu0 %334, %v289
      %v336 = vpop.permute.xlu0 %335
      %339 = vset.pattern.permute.xlu0 0
      %340 = vperm.xlu0 %339, %v290
      %v341 = vpop.permute.xlu0 %340
      %344 = vset.pattern.permute.xlu0 0
      %345 = vperm.xlu0 %344, %v291
      %v346 = vpop.permute.xlu0 %345
      %349 = vset.pattern.permute.xlu0 0
      %350 = vperm.xlu0 %349, %v292
      %v351 = vpop.permute.xlu0 %350
      %354 = vset.pattern.permute.xlu0 0
      %355 = vperm.xlu0 %354, %v293
      %v356 = vpop.permute.xlu0 %355
      %359 = vset.pattern.permute.xlu0 0
      %360 = vperm.xlu0 %359, %v294
      %v361 = vpop.permute.xlu0 %360
      %364 = vset.pattern.permute.xlu0 0
      %365 = vperm.xlu0 %364, %v295
      %v366 = vpop.permute.xlu0 %365
      %369 = vset.pattern.permute.xlu0 0
      %370 = vperm.xlu0 %369, %v296
      %v371 = vpop.permute.xlu0 %370
      %374 = vset.pattern.permute.xlu0 0
      %375 = vperm.xlu0 %374, %v297
      %v376 = vpop.permute.xlu0 %375
      %379 = vset.pattern.permute.xlu0 0
      %380 = vperm.xlu0 %379, %v298
      %v381 = vpop.permute.xlu0 %380
      %384 = vset.pattern.permute.xlu0 0
      %385 = vperm.xlu0 %384, %v299
      %v386 = vpop.permute.xlu0 %385
      %389 = vset.pattern.permute.xlu0 0
      %390 = vperm.xlu0 %389, %v300
      %v391 = vpop.permute.xlu0 %390
      %394 = vset.pattern.permute.xlu0 0
      %395 = vperm.xlu0 %394, %v301
      %v396 = vpop.permute.xlu0 %395
      %v398 = vlaneseq
      %v399 = vshrl.u32 %v398, 7
      %v400 = vsub.s32 0, %v399
      %v401 = vrot.slane %v302, %v400
      %v402 = vmul.f32 %v306, %v401
      %v403 = vmul.f32 %v311, %v401
      %v404 = vmul.f32 %v316, %v401
      %v405 = vmul.f32 %v321, %v401
      %v406 = vmul.f32 %v326, %v401
      %v407 = vmul.f32 %v331, %v401
      %v408 = vmul.f32 %v336, %v401
      %v409 = vmul.f32 %v341, %v401
      %v410 = vmul.f32 %v346, %v401
      %v411 = vmul.f32 %v351, %v401
      %v412 = vmul.f32 %v356, %v401
      %v413 = vmul.f32 %v361, %v401
      %v414 = vmul.f32 %v366, %v401
      %v415 = vmul.f32 %v371, %v401
      %v416 = vmul.f32 %v376, %v401
      %v417 = vmul.f32 %v381, %v401
      %v418 = vmul.f32 %v386, %v401
      %v419 = vmul.f32 %v391, %v401
      %v420 = vmul.f32 %v396, %v401
      %421 = vset.pattern.permute.xlu0 1
      %422 = vperm.xlu0 %421, %v283
      %v423 = vpop.permute.xlu0 %422
      %425 = vset.pattern.permute.xlu0 1
      %426 = vperm.xlu0 %425, %v284
      %v427 = vpop.permute.xlu0 %426
      %429 = vset.pattern.permute.xlu0 1
      %430 = vperm.xlu0 %429, %v285
      %v431 = vpop.permute.xlu0 %430
      %433 = vset.pattern.permute.xlu0 1
      %434 = vperm.xlu0 %433, %v286
      %v435 = vpop.permute.xlu0 %434
      %437 = vset.pattern.permute.xlu0 1
      %438 = vperm.xlu0 %437, %v287
      %v439 = vpop.permute.xlu0 %438
      %441 = vset.pattern.permute.xlu0 1
      %442 = vperm.xlu0 %441, %v288
      %v443 = vpop.permute.xlu0 %442
      %445 = vset.pattern.permute.xlu0 1
      %446 = vperm.xlu0 %445, %v289
      %v447 = vpop.permute.xlu0 %446
      %449 = vset.pattern.permute.xlu0 1
      %450 = vperm.xlu0 %449, %v290
      %v451 = vpop.permute.xlu0 %450
      %453 = vset.pattern.permute.xlu0 1
      %454 = vperm.xlu0 %453, %v291
      %v455 = vpop.permute.xlu0 %454
      %457 = vset.pattern.permute.xlu0 1
      %458 = vperm.xlu0 %457, %v292
      %v459 = vpop.permute.xlu0 %458
      %461 = vset.pattern.permute.xlu0 1
      %462 = vperm.xlu0 %461, %v293
      %v463 = vpop.permute.xlu0 %462
      %465 = vset.pattern.permute.xlu0 1
      %466 = vperm.xlu0 %465, %v294
      %v467 = vpop.permute.xlu0 %466
      %469 = vset.pattern.permute.xlu0 1
      %470 = vperm.xlu0 %469, %v295
      %v471 = vpop.permute.xlu0 %470
      %473 = vset.pattern.permute.xlu0 1
      %474 = vperm.xlu0 %473, %v296
      %v475 = vpop.permute.xlu0 %474
      %477 = vset.pattern.permute.xlu0 1
      %478 = vperm.xlu0 %477, %v297
      %v479 = vpop.permute.xlu0 %478
      %481 = vset.pattern.permute.xlu0 1
      %482 = vperm.xlu0 %481, %v298
      %v483 = vpop.permute.xlu0 %482
      %485 = vset.pattern.permute.xlu0 1
      %486 = vperm.xlu0 %485, %v299
      %v487 = vpop.permute.xlu0 %486
      %489 = vset.pattern.permute.xlu0 1
      %490 = vperm.xlu0 %489, %v300
      %v491 = vpop.permute.xlu0 %490
      %493 = vset.pattern.permute.xlu0 1
      %494 = vperm.xlu0 %493, %v301
      %v495 = vpop.permute.xlu0 %494
      %v497 = vlaneseq
      %v498 = vshrl.u32 %v497, 7
      %v499 = vsub.s32 1, %v498
      %v500 = vrot.slane %v302, %v499
      %v501 = vmul.f32 %v423, %v500
      %v502 = vmul.f32 %v427, %v500
      %v503 = vmul.f32 %v431, %v500
      %v504 = vmul.f32 %v435, %v500
      %v505 = vmul.f32 %v439, %v500
      %v506 = vmul.f32 %v443, %v500
      %v507 = vmul.f32 %v447, %v500
      %v508 = vmul.f32 %v451, %v500
      %v509 = vmul.f32 %v455, %v500
      %v510 = vmul.f32 %v459, %v500
      %v511 = vmul.f32 %v463, %v500
      %v512 = vmul.f32 %v467, %v500
      %v513 = vmul.f32 %v471, %v500
      %v514 = vmul.f32 %v475, %v500
      %v515 = vmul.f32 %v479, %v500
      %v516 = vmul.f32 %v483, %v500
      %v517 = vmul.f32 %v487, %v500
      %v518 = vmul.f32 %v491, %v500
      %v519 = vmul.f32 %v495, %v500
      %v520 = vadd.f32 %v402, %v501
      %v521 = vadd.f32 %v403, %v502
      %v522 = vadd.f32 %v404, %v503
      %v523 = vadd.f32 %v405, %v504
      %v524 = vadd.f32 %v406, %v505
      %v525 = vadd.f32 %v407, %v506
      %v526 = vadd.f32 %v408, %v507
      %v527 = vadd.f32 %v409, %v508
      %v528 = vadd.f32 %v410, %v509
      %v529 = vadd.f32 %v411, %v510
      %v530 = vadd.f32 %v412, %v511
      %v531 = vadd.f32 %v413, %v512
      %v532 = vadd.f32 %v414, %v513
      %v533 = vadd.f32 %v415, %v514
      %v534 = vadd.f32 %v416, %v515
      %v535 = vadd.f32 %v417, %v516
      %v536 = vadd.f32 %v418, %v517
      %v537 = vadd.f32 %v419, %v518
      %v538 = vadd.f32 %v420, %v519
      %v539 = vld [vmem:[%s2] sm:$0x1]
      %v541 = vlaneseq
      %v542 = vshrl.u32 %v541, 7
      %v543 = vsub.s32 0, %v542
      %v544 = vrot.slane %v539, %v543
      %v546 = vadd.f32 %v520, %v544
      %v547 = vadd.f32 %v521, %v544
      %v548 = vadd.f32 %v522, %v544
      %v549 = vadd.f32 %v523, %v544
      %v550 = vadd.f32 %v524, %v544
      %v551 = vadd.f32 %v525, %v544
      %v552 = vadd.f32 %v526, %v544
      %v553 = vadd.f32 %v527, %v544
      %v554 = vadd.f32 %v528, %v544
      %v555 = vadd.f32 %v529, %v544
      %v556 = vadd.f32 %v530, %v544
      %v557 = vadd.f32 %v531, %v544
      %v558 = vadd.f32 %v532, %v544
      %v559 = vadd.f32 %v533, %v544
      %v560 = vadd.f32 %v534, %v544
      %v561 = vadd.f32 %v535, %v544
      %v562 = vadd.f32 %v536, %v544
      %v563 = vadd.f32 %v537, %v544
      %v564 = vadd.f32 %v538, %v544
      %vm565 = vcmp.gt.f32.partialorder %v546, 0.0
      %vm566 = vcmp.gt.f32.partialorder %v547, 0.0
      %vm567 = vcmp.gt.f32.partialorder %v548, 0.0
      %vm568 = vcmp.gt.f32.partialorder %v549, 0.0
      %vm569 = vcmp.gt.f32.partialorder %v550, 0.0
      %vm570 = vcmp.gt.f32.partialorder %v551, 0.0
      %vm571 = vcmp.gt.f32.partialorder %v552, 0.0
      %vm572 = vcmp.gt.f32.partialorder %v553, 0.0
      %vm573 = vcmp.gt.f32.partialorder %v554, 0.0
      %vm574 = vcmp.gt.f32.partialorder %v555, 0.0
      %vm575 = vcmp.gt.f32.partialorder %v556, 0.0
      %vm576 = vcmp.gt.f32.partialorder %v557, 0.0
      %vm577 = vcmp.gt.f32.partialorder %v558, 0.0
      %vm578 = vcmp.gt.f32.partialorder %v559, 0.0
      %vm579 = vcmp.gt.f32.partialorder %v560, 0.0
      %vm580 = vcmp.gt.f32.partialorder %v561, 0.0
      %vm581 = vcmp.gt.f32.partialorder %v562, 0.0
      %vm582 = vcmp.gt.f32.partialorder %v563, 0.0
      %vm583 = vcmp.gt.f32.partialorder %v564, 0.0
      %v584 = vmul.f32 %v546, 0.2
      %v585 = vmul.f32 %v547, 0.2
      %v586 = vmul.f32 %v548, 0.2
      %v587 = vmul.f32 %v549, 0.2
      %v588 = vmul.f32 %v550, 0.2
      %v589 = vmul.f32 %v551, 0.2
      %v590 = vmul.f32 %v552, 0.2
      %v591 = vmul.f32 %v553, 0.2
      %v592 = vmul.f32 %v554, 0.2
      %v593 = vmul.f32 %v555, 0.2
      %v594 = vmul.f32 %v556, 0.2
      %v595 = vmul.f32 %v557, 0.2
      %v596 = vmul.f32 %v558, 0.2
      %v597 = vmul.f32 %v559, 0.2
      %v598 = vmul.f32 %v560, 0.2
      %v599 = vmul.f32 %v561, 0.2
      %v600 = vmul.f32 %v562, 0.2
      %v601 = vmul.f32 %v563, 0.2
      %v602 = vmul.f32 %v564, 0.2
      %v603 = vsel %vm565, %v546, %v584
      %v604 = vsel %vm566, %v547, %v585
      %v605 = vsel %vm567, %v548, %v586
      %v606 = vsel %vm568, %v549, %v587
      %v607 = vsel %vm569, %v550, %v588
      %v608 = vsel %vm570, %v551, %v589
      %v609 = vsel %vm571, %v552, %v590
      %v610 = vsel %vm572, %v553, %v591
      %v611 = vsel %vm573, %v554, %v592
      %v612 = vsel %vm574, %v555, %v593
      %v613 = vsel %vm575, %v556, %v594
      %v614 = vsel %vm576, %v557, %v595
      %v615 = vsel %vm577, %v558, %v596
      %v616 = vsel %vm578, %v559, %v597
      %v617 = vsel %vm579, %v560, %v598
      %v618 = vsel %vm580, %v561, %v599
      %v619 = vsel %vm581, %v562, %v600
      %v620 = vsel %vm582, %v563, %v601
      %v621 = vsel %vm583, %v564, %v602
      %v622 = vpack.c.bf16 %v604, %v603
      %v623 = vpack.c.bf16 %v606, %v605
      %v624 = vpack.c.bf16 %v608, %v607
      %v625 = vpack.c.bf16 %v610, %v609
      %v626 = vpack.c.bf16 %v612, %v611
      %v627 = vpack.c.bf16 %v614, %v613
      %v628 = vpack.c.bf16 %v616, %v615
      %v629 = vpack.c.bf16 %v618, %v617
      %v630 = vpack.c.bf16 %v620, %v619
      %v631 = vpack.c.bf16 %v621, %v621
      %v632 = vld [vmem:[%s3] sm:$0xf]
      %v633 = vld [vmem:[%s3 + $0x4] sm:$0xf]
      %v634 = vld [vmem:[%s3 + $0x8] sm:$0xf]
      %v635 = vld [vmem:[%s3 + $0xc] sm:$0xf]
      %v636 = vld [vmem:[%s3 + $0x10] sm:$0xf]
      %v637 = vld [vmem:[%s3 + $0x14] sm:$0xf]
      %v638 = vld [vmem:[%s3 + $0x18] sm:$0xf]
      %v639 = vld [vmem:[%s3 + $0x1c] sm:$0xf]
      %v640 = vld [vmem:[%s3 + $0x20] sm:$0xf]
      %v641 = vld [vmem:[%s3 + $0x24] sm:$0xf]
      %v642 = vld [vmem:[%s3 + $0x28] sm:$0xf]
      %v643 = vld [vmem:[%s3 + $0x2c] sm:$0xf]
      %v644 = vld [vmem:[%s3 + $0x30] sm:$0xf]
      %v645 = vld [vmem:[%s3 + $0x34] sm:$0xf]
      %v646 = vld [vmem:[%s3 + $0x38] sm:$0xf]
      %v647 = vld [vmem:[%s3 + $0x3c] sm:$0xf]
      %v648 = vld [vmem:[%s4] sm:$0x1]
      %v650 = vlaneseq
      %v651 = vshrl.u32 %v650, 7
      %v652 = vsub.s32 0, %v651
      %v653 = vrot.slane %v648, %v652
      %v671 = vunpack.c.l.b16 %v632
      %v672 = vunpack.c.l.b16 %v633
      %v673 = vunpack.c.l.b16 %v634
      %v674 = vunpack.c.l.b16 %v635
      %v675 = vunpack.c.l.b16 %v636
      %v676 = vunpack.c.l.b16 %v637
      %v677 = vunpack.c.l.b16 %v638
      %v678 = vunpack.c.l.b16 %v639
      %v679 = vunpack.c.l.b16 %v640
      %v680 = vunpack.c.l.b16 %v641
      %v681 = vunpack.c.l.b16 %v642
      %v682 = vunpack.c.l.b16 %v643
      %v683 = vunpack.c.l.b16 %v644
      %v684 = vunpack.c.l.b16 %v645
      %v685 = vunpack.c.l.b16 %v646
      %v686 = vunpack.c.l.b16 %v647
      %v687 = vpack.c.b16 %v672, %v671
      %v688 = vpack.c.b16 %v674, %v673
      %v689 = vpack.c.b16 %v676, %v675
      %v690 = vpack.c.b16 %v678, %v677
      %v691 = vpack.c.b16 %v680, %v679
      %v692 = vpack.c.b16 %v682, %v681
      %v693 = vpack.c.b16 %v684, %v683
      %v694 = vpack.c.b16 %v686, %v685
      %703 = vmatprep.subr.bf16.mxu0 0
      %704 = vmatpush1.bf16.msra.mxu0 %v687
      %705 = vmatprep.subr.bf16.mxu0 0
      %706 = vmatpush1.bf16.msra.mxu0 %v688
      %707 = vmatprep.subr.bf16.mxu0 0
      %708 = vmatpush1.bf16.msra.mxu0 %v689
      %709 = vmatprep.subr.bf16.mxu0 0
      %710 = vmatpush1.bf16.msra.mxu0 %v690
      %711 = vmatprep.subr.bf16.mxu0 0
      %712 = vmatpush1.bf16.msra.mxu0 %v691
      %713 = vmatprep.subr.bf16.mxu0 0
      %714 = vmatpush1.bf16.msra.mxu0 %v692
      %715 = vmatprep.subr.bf16.mxu0 0
      %716 = vmatpush1.bf16.msra.mxu0 %v693
      %717 = vmatprep.subr.bf16.mxu0 0
      %718 = vmatpush1.bf16.msra.mxu0 %v694
      %719 = vmatprep.subr.bf16.mxu0 0
      %720 = vmatpush1.bf16.msra.mxu0 0
      %721 = vmatprep.subr.bf16.mxu0 0
      %722 = vmatpush1.bf16.msra.mxu0 0
      %723 = vmatprep.subr.bf16.mxu0 0
      %724 = vmatpush1.bf16.msra.mxu0 0
      %725 = vmatprep.subr.bf16.mxu0 0
      %726 = vmatpush1.bf16.msra.mxu0 0
      %727 = vmatprep.subr.bf16.mxu0 0
      %728 = vmatpush1.bf16.msra.mxu0 0
      %729 = vmatprep.subr.bf16.mxu0 0
      %730 = vmatpush1.bf16.msra.mxu0 0
      %731 = vmatprep.subr.bf16.mxu0 0
      %732 = vmatpush1.bf16.msra.mxu0 0
      %733 = vmatprep.subr.bf16.mxu0 0
      %734 = vmatpush1.bf16.msra.mxu0 0
      %735 = vmatprep.mubr.bf16.mxu0 0
      %736 = vmatmul.mubr.bf16.gmra.mrb[0].mxu0 %v622
      %v737 = vpop.f32.mrb[0].mxu0
      %v738 = vadd.f32 %v653, %v737
      %v739 = vpop.f32.mrb[0].mxu0
      %v740 = vpop.f32.mrb[0].mxu0
      %v741 = vadd.f32 %v653, %v740
      %v742 = vpop.f32.mrb[0].mxu0
      %743 = vmatprep.mubr.bf16.mxu0 0
      %744 = vmatmul.mubr.bf16.gmra.mrb[0].mxu0 %v623
      %v745 = vpop.f32.mrb[0].mxu0
      %v746 = vadd.f32 %v653, %v745
      %v747 = vpop.f32.mrb[0].mxu0
      %v748 = vpop.f32.mrb[0].mxu0
      %v749 = vadd.f32 %v653, %v748
      %v750 = vpop.f32.mrb[0].mxu0
      %751 = vmatprep.mubr.bf16.mxu0 0
      %752 = vmatmul.mubr.bf16.gmra.mrb[0].mxu0 %v624
      %v753 = vpop.f32.mrb[0].mxu0
      %v754 = vadd.f32 %v653, %v753
      %v755 = vpop.f32.mrb[0].mxu0
      %v756 = vpop.f32.mrb[0].mxu0
      %v757 = vadd.f32 %v653, %v756
      %v758 = vpop.f32.mrb[0].mxu0
      %759 = vmatprep.mubr.bf16.mxu0 0
      %760 = vmatmul.mubr.bf16.gmra.mrb[0].mxu0 %v625
      %v761 = vpop.f32.mrb[0].mxu0
      %v762 = vadd.f32 %v653, %v761
      %v763 = vpop.f32.mrb[0].mxu0
      %v764 = vpop.f32.mrb[0].mxu0
      %v765 = vadd.f32 %v653, %v764
      %v766 = vpop.f32.mrb[0].mxu0
      %767 = vmatprep.mubr.bf16.mxu0 0
      %768 = vmatmul.mubr.bf16.gmra.mrb[0].mxu0 %v626
      %v769 = vpop.f32.mrb[0].mxu0
      %v770 = vadd.f32 %v653, %v769
      %v771 = vpop.f32.mrb[0].mxu0
      %v772 = vpop.f32.mrb[0].mxu0
      %v773 = vadd.f32 %v653, %v772
      %v774 = vpop.f32.mrb[0].mxu0
      %775 = vmatprep.mubr.bf16.mxu0 0
      %776 = vmatmul.mubr.bf16.gmra.mrb[0].mxu0 %v627
      %v777 = vpop.f32.mrb[0].mxu0
      %v778 = vadd.f32 %v653, %v777
      %v779 = vpop.f32.mrb[0].mxu0
      %v780 = vpop.f32.mrb[0].mxu0
      %v781 = vadd.f32 %v653, %v780
      %v782 = vpop.f32.mrb[0].mxu0
      %783 = vmatprep.mubr.bf16.mxu0 0
      %784 = vmatmul.mubr.bf16.gmra.mrb[0].mxu0 %v628
      %v785 = vpop.f32.mrb[0].mxu0
      %v786 = vadd.f32 %v653, %v785
      %v787 = vpop.f32.mrb[0].mxu0
      %v788 = vpop.f32.mrb[0].mxu0
      %v789 = vadd.f32 %v653, %v788
      %v790 = vpop.f32.mrb[0].mxu0
      %791 = vmatprep.mubr.bf16.mxu0 0
      %792 = vmatmul.mubr.bf16.gmra.mrb[0].mxu0 %v629
      %v793 = vpop.f32.mrb[0].mxu0
      %v794 = vadd.f32 %v653, %v793
      %v795 = vpop.f32.mrb[0].mxu0
      %v796 = vpop.f32.mrb[0].mxu0
      %v797 = vadd.f32 %v653, %v796
      %v798 = vpop.f32.mrb[0].mxu0
      %799 = vmatprep.mubr.bf16.mxu0 0
      %800 = vmatmul.mubr.bf16.gmra.mrb[0].mxu0 %v630
      %v801 = vpop.f32.mrb[0].mxu0
      %v802 = vadd.f32 %v653, %v801
      %v803 = vpop.f32.mrb[0].mxu0
      %v804 = vpop.f32.mrb[0].mxu0
      %v805 = vadd.f32 %v653, %v804
      %v806 = vpop.f32.mrb[0].mxu0
      %807 = vmatprep.mubr.bf16.mxu0 0
      %808 = vmatmul.mubr.bf16.gmra.mrb[0].mxu0 %v631
      %v809 = vpop.f32.mrb[0].mxu0
      %v810 = vadd.f32 %v653, %v809
      %v811 = vpop.f32.mrb[0].mxu0
      %v812 = vpop.f32.mrb[0].mxu0
      %v813 = vpop.f32.mrb[0].mxu0
      %814 = vdwg.mxu0
      %vm815 = vcmp.gt.f32.partialorder %v738, 0.0
      %vm816 = vcmp.gt.f32.partialorder %v741, 0.0
      %vm817 = vcmp.gt.f32.partialorder %v746, 0.0
      %vm818 = vcmp.gt.f32.partialorder %v749, 0.0
      %vm819 = vcmp.gt.f32.partialorder %v754, 0.0
      %vm820 = vcmp.gt.f32.partialorder %v757, 0.0
      %vm821 = vcmp.gt.f32.partialorder %v762, 0.0
      %vm822 = vcmp.gt.f32.partialorder %v765, 0.0
      %vm823 = vcmp.gt.f32.partialorder %v770, 0.0
      %vm824 = vcmp.gt.f32.partialorder %v773, 0.0
      %vm825 = vcmp.gt.f32.partialorder %v778, 0.0
      %vm826 = vcmp.gt.f32.partialorder %v781, 0.0
      %vm827 = vcmp.gt.f32.partialorder %v786, 0.0
      %vm828 = vcmp.gt.f32.partialorder %v789, 0.0
      %vm829 = vcmp.gt.f32.partialorder %v794, 0.0
      %vm830 = vcmp.gt.f32.partialorder %v797, 0.0
      %vm831 = vcmp.gt.f32.partialorder %v802, 0.0
      %vm832 = vcmp.gt.f32.partialorder %v805, 0.0
      %vm833 = vcmp.gt.f32.partialorder %v810, 0.0
      %v834 = vmul.f32 %v738, 0.2
      %v835 = vmul.f32 %v741, 0.2
      %v836 = vmul.f32 %v746, 0.2
      %v837 = vmul.f32 %v749, 0.2
      %v838 = vmul.f32 %v754, 0.2
      %v839 = vmul.f32 %v757, 0.2
      %v840 = vmul.f32 %v762, 0.2
      %v841 = vmul.f32 %v765, 0.2
      %v842 = vmul.f32 %v770, 0.2
      %v843 = vmul.f32 %v773, 0.2
      %v844 = vmul.f32 %v778, 0.2
      %v845 = vmul.f32 %v781, 0.2
      %v846 = vmul.f32 %v786, 0.2
      %v847 = vmul.f32 %v789, 0.2
      %v848 = vmul.f32 %v794, 0.2
      %v849 = vmul.f32 %v797, 0.2
      %v850 = vmul.f32 %v802, 0.2
      %v851 = vmul.f32 %v805, 0.2
      %v852 = vmul.f32 %v810, 0.2
      %v853 = vsel %vm815, %v738, %v834
      %v854 = vsel %vm816, %v741, %v835
      %v855 = vsel %vm817, %v746, %v836
      %v856 = vsel %vm818, %v749, %v837
      %v857 = vsel %vm819, %v754, %v838
      %v858 = vsel %vm820, %v757, %v839
      %v859 = vsel %vm821, %v762, %v840
      %v860 = vsel %vm822, %v765, %v841
      %v861 = vsel %vm823, %v770, %v842
      %v862 = vsel %vm824, %v773, %v843
      %v863 = vsel %vm825, %v778, %v844
      %v864 = vsel %vm826, %v781, %v845
      %v865 = vsel %vm827, %v786, %v846
      %v866 = vsel %vm828, %v789, %v847
      %v867 = vsel %vm829, %v794, %v848
      %v868 = vsel %vm830, %v797, %v849
      %v869 = vsel %vm831, %v802, %v850
      %v870 = vsel %vm832, %v805, %v851
      %v871 = vsel %vm833, %v810, %v852
      %v872 = vpack.c.bf16 %v854, %v853
      %v873 = vpack.c.bf16 %v856, %v855
      %v874 = vpack.c.bf16 %v858, %v857
      %v875 = vpack.c.bf16 %v860, %v859
      %v876 = vpack.c.bf16 %v862, %v861
      %v877 = vpack.c.bf16 %v864, %v863
      %v878 = vpack.c.bf16 %v866, %v865
      %v879 = vpack.c.bf16 %v868, %v867
      %v880 = vpack.c.bf16 %v870, %v869
      %v881 = vpack.c.bf16 %v871, %v871
      %v882 = vld [vmem:[%s5] sm:$0xf]
      %v883 = vld [vmem:[%s5 + $0x4] sm:$0xf]
      %v884 = vld [vmem:[%s5 + $0x8] sm:$0xf]
      %v885 = vld [vmem:[%s5 + $0xc] sm:$0xf]
      %v886 = vld [vmem:[%s5 + $0x10] sm:$0xf]
      %v887 = vld [vmem:[%s5 + $0x14] sm:$0xf]
      %v888 = vld [vmem:[%s5 + $0x18] sm:$0xf]
      %v889 = vld [vmem:[%s5 + $0x1c] sm:$0xf]
      %v890 = vld [vmem:[%s5 + $0x20] sm:$0xf]
      %v891 = vld [vmem:[%s5 + $0x24] sm:$0xf]
      %v892 = vld [vmem:[%s5 + $0x28] sm:$0xf]
      %v893 = vld [vmem:[%s5 + $0x2c] sm:$0xf]
      %v894 = vld [vmem:[%s5 + $0x30] sm:$0xf]
      %v895 = vld [vmem:[%s5 + $0x34] sm:$0xf]
      %v896 = vld [vmem:[%s5 + $0x38] sm:$0xf]
      %v897 = vld [vmem:[%s5 + $0x3c] sm:$0xf]
      %v898 = vld [vmem:[%s6] sm:$0x1]
      %v900 = vlaneseq
      %v901 = vshrl.u32 %v900, 7
      %v902 = vsub.s32 0, %v901
      %v903 = vrot.slane %v898, %v902
      %v921 = vunpack.c.l.b16 %v882
      %v922 = vunpack.c.l.b16 %v883
      %v923 = vunpack.c.l.b16 %v884
      %v924 = vunpack.c.l.b16 %v885
      %v925 = vunpack.c.l.b16 %v886
      %v926 = vunpack.c.l.b16 %v887
      %v927 = vunpack.c.l.b16 %v888
      %v928 = vunpack.c.l.b16 %v889
      %v929 = vunpack.c.l.b16 %v890
      %v930 = vunpack.c.l.b16 %v891
      %v931 = vunpack.c.l.b16 %v892
      %v932 = vunpack.c.l.b16 %v893
      %v933 = vunpack.c.l.b16 %v894
      %v934 = vunpack.c.l.b16 %v895
      %v935 = vunpack.c.l.b16 %v896
      %v936 = vunpack.c.l.b16 %v897
      %v937 = vpack.c.b16 %v922, %v921
      %v938 = vpack.c.b16 %v924, %v923
      %v939 = vpack.c.b16 %v926, %v925
      %v940 = vpack.c.b16 %v928, %v927
      %v941 = vpack.c.b16 %v930, %v929
      %v942 = vpack.c.b16 %v932, %v931
      %v943 = vpack.c.b16 %v934, %v933
      %v944 = vpack.c.b16 %v936, %v935
      %953 = vmatprep.subr.bf16.mxu0 0
      %954 = vmatpush1.bf16.msra.mxu0 %v937
      %955 = vmatprep.subr.bf16.mxu0 0
      %956 = vmatpush1.bf16.msra.mxu0 %v938
      %957 = vmatprep.subr.bf16.mxu0 0
      %958 = vmatpush1.bf16.msra.mxu0 %v939
      %959 = vmatprep.subr.bf16.mxu0 0
      %960 = vmatpush1.bf16.msra.mxu0 %v940
      %961 = vmatprep.subr.bf16.mxu0 0
      %962 = vmatpush1.bf16.msra.mxu0 %v941
      %963 = vmatprep.subr.bf16.mxu0 0
      %964 = vmatpush1.bf16.msra.mxu0 %v942
      %965 = vmatprep.subr.bf16.mxu0 0
      %966 = vmatpush1.bf16.msra.mxu0 %v943
      %967 = vmatprep.subr.bf16.mxu0 0
      %968 = vmatpush1.bf16.msra.mxu0 %v944
      %969 = vmatprep.subr.bf16.mxu0 0
      %970 = vmatpush1.bf16.msra.mxu0 0
      %971 = vmatprep.subr.bf16.mxu0 0
      %972 = vmatpush1.bf16.msra.mxu0 0
      %973 = vmatprep.subr.bf16.mxu0 0
      %974 = vmatpush1.bf16.msra.mxu0 0
      %975 = vmatprep.subr.bf16.mxu0 0
      %976 = vmatpush1.bf16.msra.mxu0 0
      %977 = vmatprep.subr.bf16.mxu0 0
      %978 = vmatpush1.bf16.msra.mxu0 0
      %979 = vmatprep.subr.bf16.mxu0 0
      %980 = vmatpush1.bf16.msra.mxu0 0
      %981 = vmatprep.subr.bf16.mxu0 0
      %982 = vmatpush1.bf16.msra.mxu0 0
      %983 = vmatprep.subr.bf16.mxu0 0
      %984 = vmatpush1.bf16.msra.mxu0 0
      %985 = vmatprep.mubr.bf16.mxu0 0
      %986 = vmatmul.mubr.bf16.gmra.mrb[0].mxu0 %v872
      %v987 = vpop.f32.mrb[0].mxu0
      %v988 = vadd.f32 %v903, %v987
      %v989 = vpop.f32.mrb[0].mxu0
      %v990 = vpop.f32.mrb[0].mxu0
      %v991 = vadd.f32 %v903, %v990
      %v992 = vpop.f32.mrb[0].mxu0
      %993 = vmatprep.mubr.bf16.mxu0 0
      %994 = vmatmul.mubr.bf16.gmra.mrb[0].mxu0 %v873
      %v995 = vpop.f32.mrb[0].mxu0
      %v996 = vadd.f32 %v903, %v995
      %v997 = vpop.f32.mrb[0].mxu0
      %v998 = vpop.f32.mrb[0].mxu0
      %v999 = vadd.f32 %v903, %v998
      %v1000 = vpop.f32.mrb[0].mxu0
      %1001 = vmatprep.mubr.bf16.mxu0 0
      %1002 = vmatmul.mubr.bf16.gmra.mrb[0].mxu0 %v874
      %v1003 = vpop.f32.mrb[0].mxu0
      %v1004 = vadd.f32 %v903, %v1003
      %v1005 = vpop.f32.mrb[0].mxu0
      %v1006 = vpop.f32.mrb[0].mxu0
      %v1007 = vadd.f32 %v903, %v1006
      %v1008 = vpop.f32.mrb[0].mxu0
      %1009 = vmatprep.mubr.bf16.mxu0 0
      %1010 = vmatmul.mubr.bf16.gmra.mrb[0].mxu0 %v875
      %v1011 = vpop.f32.mrb[0].mxu0
      %v1012 = vadd.f32 %v903, %v1011
      %v1013 = vpop.f32.mrb[0].mxu0
      %v1014 = vpop.f32.mrb[0].mxu0
      %v1015 = vadd.f32 %v903, %v1014
      %v1016 = vpop.f32.mrb[0].mxu0
      %1017 = vmatprep.mubr.bf16.mxu0 0
      %1018 = vmatmul.mubr.bf16.gmra.mrb[0].mxu0 %v876
      %v1019 = vpop.f32.mrb[0].mxu0
      %v1020 = vadd.f32 %v903, %v1019
      %v1021 = vpop.f32.mrb[0].mxu0
      %v1022 = vpop.f32.mrb[0].mxu0
      %v1023 = vadd.f32 %v903, %v1022
      %v1024 = vpop.f32.mrb[0].mxu0
      %1025 = vmatprep.mubr.bf16.mxu0 0
      %1026 = vmatmul.mubr.bf16.gmra.mrb[0].mxu0 %v877
      %v1027 = vpop.f32.mrb[0].mxu0
      %v1028 = vadd.f32 %v903, %v1027
      %v1029 = vpop.f32.mrb[0].mxu0
      %v1030 = vpop.f32.mrb[0].mxu0
      %v1031 = vadd.f32 %v903, %v1030
      %v1032 = vpop.f32.mrb[0].mxu0
      %1033 = vmatprep.mubr.bf16.mxu0 0
      %1034 = vmatmul.mubr.bf16.gmra.mrb[0].mxu0 %v878
      %v1035 = vpop.f32.mrb[0].mxu0
      %v1036 = vadd.f32 %v903, %v1035
      %v1037 = vpop.f32.mrb[0].mxu0
      %v1038 = vpop.f32.mrb[0].mxu0
      %v1039 = vadd.f32 %v903, %v1038
      %v1040 = vpop.f32.mrb[0].mxu0
      %1041 = vmatprep.mubr.bf16.mxu0 0
      %1042 = vmatmul.mubr.bf16.gmra.mrb[0].mxu0 %v879
      %v1043 = vpop.f32.mrb[0].mxu0
      %v1044 = vadd.f32 %v903, %v1043
      %v1045 = vpop.f32.mrb[0].mxu0
      %v1046 = vpop.f32.mrb[0].mxu0
      %v1047 = vadd.f32 %v903, %v1046
      %v1048 = vpop.f32.mrb[0].mxu0
      %1049 = vmatprep.mubr.bf16.mxu0 0
      %1050 = vmatmul.mubr.bf16.gmra.mrb[0].mxu0 %v880
      %v1051 = vpop.f32.mrb[0].mxu0
      %v1052 = vadd.f32 %v903, %v1051
      %v1053 = vpop.f32.mrb[0].mxu0
      %v1054 = vpop.f32.mrb[0].mxu0
      %v1055 = vadd.f32 %v903, %v1054
      %v1056 = vpop.f32.mrb[0].mxu0
      %1057 = vmatprep.mubr.bf16.mxu0 0
      %1058 = vmatmul.mubr.bf16.gmra.mrb[0].mxu0 %v881
      %v1059 = vpop.f32.mrb[0].mxu0
      %v1060 = vadd.f32 %v903, %v1059
      %v1061 = vpop.f32.mrb[0].mxu0
      %v1062 = vpop.f32.mrb[0].mxu0
      %v1063 = vpop.f32.mrb[0].mxu0
      %1064 = vdwg.mxu0
      %v1065 = vmul.f32 %v988, 0.5
      %v1066 = vmul.f32 %v991, 0.5
      %v1067 = vmul.f32 %v996, 0.5
      %v1068 = vmul.f32 %v999, 0.5
      %v1069 = vmul.f32 %v1004, 0.5
      %v1070 = vmul.f32 %v1007, 0.5
      %v1071 = vmul.f32 %v1012, 0.5
      %v1072 = vmul.f32 %v1015, 0.5
      %v1073 = vmul.f32 %v1020, 0.5
      %v1074 = vmul.f32 %v1023, 0.5
      %v1075 = vmul.f32 %v1028, 0.5
      %v1076 = vmul.f32 %v1031, 0.5
      %v1077 = vmul.f32 %v1036, 0.5
      %v1078 = vmul.f32 %v1039, 0.5
      %v1079 = vmul.f32 %v1044, 0.5
      %v1080 = vmul.f32 %v1047, 0.5
      %v1081 = vmul.f32 %v1052, 0.5
      %v1082 = vmul.f32 %v1055, 0.5
      %v1083 = vmul.f32 %v1060, 0.5
      %v1084 = vtanh.pop %v1065
      %v1085 = vtanh.pop %v1066
      %v1086 = vtanh.pop %v1067
      %v1087 = vtanh.pop %v1068
      %v1088 = vtanh.pop %v1069
      %v1089 = vtanh.pop %v1070
      %v1090 = vtanh.pop %v1071
      %v1091 = vtanh.pop %v1072
      %v1092 = vtanh.pop %v1073
      %v1093 = vtanh.pop %v1074
      %v1094 = vtanh.pop %v1075
      %v1095 = vtanh.pop %v1076
      %v1096 = vtanh.pop %v1077
      %v1097 = vtanh.pop %v1078
      %v1098 = vtanh.pop %v1079
      %v1099 = vtanh.pop %v1080
      %v1100 = vtanh.pop %v1081
      %v1101 = vtanh.pop %v1082
      %v1102 = vtanh.pop %v1083
      %v1103 = vadd.f32 %v1084, 1.0
      %v1104 = vadd.f32 %v1085, 1.0
      %v1105 = vadd.f32 %v1086, 1.0
      %v1106 = vadd.f32 %v1087, 1.0
      %v1107 = vadd.f32 %v1088, 1.0
      %v1108 = vadd.f32 %v1089, 1.0
      %v1109 = vadd.f32 %v1090, 1.0
      %v1110 = vadd.f32 %v1091, 1.0
      %v1111 = vadd.f32 %v1092, 1.0
      %v1112 = vadd.f32 %v1093, 1.0
      %v1113 = vadd.f32 %v1094, 1.0
      %v1114 = vadd.f32 %v1095, 1.0
      %v1115 = vadd.f32 %v1096, 1.0
      %v1116 = vadd.f32 %v1097, 1.0
      %v1117 = vadd.f32 %v1098, 1.0
      %v1118 = vadd.f32 %v1099, 1.0
      %v1119 = vadd.f32 %v1100, 1.0
      %v1120 = vadd.f32 %v1101, 1.0
      %v1121 = vadd.f32 %v1102, 1.0
      %v1122 = vmul.f32 %v1103, 0.5
      %v1123 = vmul.f32 %v1104, 0.5
      %v1124 = vmul.f32 %v1105, 0.5
      %v1125 = vmul.f32 %v1106, 0.5
      %v1126 = vmul.f32 %v1107, 0.5
      %v1127 = vmul.f32 %v1108, 0.5
      %v1128 = vmul.f32 %v1109, 0.5
      %v1129 = vmul.f32 %v1110, 0.5
      %v1130 = vmul.f32 %v1111, 0.5
      %v1131 = vmul.f32 %v1112, 0.5
      %v1132 = vmul.f32 %v1113, 0.5
      %v1133 = vmul.f32 %v1114, 0.5
      %v1134 = vmul.f32 %v1115, 0.5
      %v1135 = vmul.f32 %v1116, 0.5
      %v1136 = vmul.f32 %v1117, 0.5
      %v1137 = vmul.f32 %v1118, 0.5
      %v1138 = vmul.f32 %v1119, 0.5
      %v1139 = vmul.f32 %v1120, 0.5
      %v1140 = vmul.f32 %v1121, 0.5
      %v1141 = vmul.f32 %v1122, 5.0
      %v1142 = vmul.f32 %v1123, 5.0
      %v1143 = vmul.f32 %v1124, 5.0
      %v1144 = vmul.f32 %v1125, 5.0
      %v1145 = vmul.f32 %v1126, 5.0
      %v1146 = vmul.f32 %v1127, 5.0
      %v1147 = vmul.f32 %v1128, 5.0
      %v1148 = vmul.f32 %v1129, 5.0
      %v1149 = vmul.f32 %v1130, 5.0
      %v1150 = vmul.f32 %v1131, 5.0
      %v1151 = vmul.f32 %v1132, 5.0
      %v1152 = vmul.f32 %v1133, 5.0
      %v1153 = vmul.f32 %v1134, 5.0
      %v1154 = vmul.f32 %v1135, 5.0
      %v1155 = vmul.f32 %v1136, 5.0
      %v1156 = vmul.f32 %v1137, 5.0
      %v1157 = vmul.f32 %v1138, 5.0
      %v1158 = vmul.f32 %v1139, 5.0
      %v1159 = vmul.f32 %v1140, 5.0
      %v1160 = vsub.f32 %v1141, 2.5
      %v1161 = vsub.f32 %v1142, 2.5
      %v1162 = vsub.f32 %v1143, 2.5
      %v1163 = vsub.f32 %v1144, 2.5
      %v1164 = vsub.f32 %v1145, 2.5
      %v1165 = vsub.f32 %v1146, 2.5
      %v1166 = vsub.f32 %v1147, 2.5
      %v1167 = vsub.f32 %v1148, 2.5
      %v1168 = vsub.f32 %v1149, 2.5
      %v1169 = vsub.f32 %v1150, 2.5
      %v1170 = vsub.f32 %v1151, 2.5
      %v1171 = vsub.f32 %v1152, 2.5
      %v1172 = vsub.f32 %v1153, 2.5
      %v1173 = vsub.f32 %v1154, 2.5
      %v1174 = vsub.f32 %v1155, 2.5
      %v1175 = vsub.f32 %v1156, 2.5
      %v1176 = vsub.f32 %v1157, 2.5
      %v1177 = vsub.f32 %v1158, 2.5
      %v1178 = vsub.f32 %v1159, 2.5
      %vm1179 = vcmask 261120
      %1180 = vst.msk [vmem:[%s280] sm:$0xff] %vm1179, %v1160
      %1181 = vst.msk [vmem:[%s280 + $0x8] sm:$0xff] %vm1179, %v1161
      %1182 = vst.msk [vmem:[%s280 + $0x10] sm:$0xff] %vm1179, %v1162
      %1183 = vst.msk [vmem:[%s280 + $0x18] sm:$0xff] %vm1179, %v1163
      %1184 = vst.msk [vmem:[%s280 + $0x20] sm:$0xff] %vm1179, %v1164
      %1185 = vst.msk [vmem:[%s280 + $0x28] sm:$0xff] %vm1179, %v1165
      %1186 = vst.msk [vmem:[%s280 + $0x30] sm:$0xff] %vm1179, %v1166
      %1187 = vst.msk [vmem:[%s280 + $0x38] sm:$0xff] %vm1179, %v1167
      %1188 = vst.msk [vmem:[%s280 + $0x40] sm:$0xff] %vm1179, %v1168
      %1189 = vst.msk [vmem:[%s280 + $0x48] sm:$0xff] %vm1179, %v1169
      %1190 = vst.msk [vmem:[%s280 + $0x50] sm:$0xff] %vm1179, %v1170
      %1191 = vst.msk [vmem:[%s280 + $0x58] sm:$0xff] %vm1179, %v1171
      %1192 = vst.msk [vmem:[%s280 + $0x60] sm:$0xff] %vm1179, %v1172
      %1193 = vst.msk [vmem:[%s280 + $0x68] sm:$0xff] %vm1179, %v1173
      %1194 = vst.msk [vmem:[%s280 + $0x70] sm:$0xff] %vm1179, %v1174
      %1195 = vst.msk [vmem:[%s280 + $0x78] sm:$0xff] %vm1179, %v1175
      %1196 = vst.msk [vmem:[%s280 + $0x80] sm:$0xff] %vm1179, %v1176
      %1197 = vst.msk [vmem:[%s280 + $0x88] sm:$0xff] %vm1179, %v1177
      %1198 = vst.msk [vmem:[%s280 + $0x90] sm:$0xff] %vm1179, %v1178
      %s1199 = smul.u32 19, %s18
      %p1200 = scmp.lt.s32.totalorder %s1199, 37
      %s1201 = scalar_select %p1200, %s1199, 37
      %s1202 = smul.addr %s1201, 8
      %s1203 = scalar_lea.vmem %s7, %s1202
      // Predicated region
      $region49: #{discriminator_forward.1} parent=47 // pred_check
        %p1204 = pneg %p188
      $region50: #{discriminator_forward.1} parent=47 // pred_check_branch
        %1206 = sbr.rel (%p1204) target = $region52
      $region51: #{discriminator_forward.1} parent=47 // pred_region
        %s1207 = smul.u32 19, %s18
      $region52: #{discriminator_forward.1} parent=47 // pred_fallthru
        _
    $region48: #{discriminator_forward.1} parent=5 // pred_fallthru
      _
    %p1208 = scmp.le.s32.totalorder 2, %s13
    // Predicated region
    $region53: #{discriminator_forward.1} parent=5 // pred_check
      %p1209 = pneg %p1208
    $region54: #{discriminator_forward.1} parent=5 // pred_check_branch
      %1211 = sbr.rel (%p1209) target = $region56
    $region55: #{discriminator_forward.1} parent=5 // pred_region
      %s1212 = ssub.s32 %s13, 2
      // Predicated region
      $region57: #{discriminator_forward.1} parent=55 // pred_check
        %p1213 = pneg %p194
      $region58: #{discriminator_forward.1} parent=55 // pred_check_branch
        %1215 = sbr.rel (%p1213) target = $region60
      $region59: #{discriminator_forward.1} parent=55 // pred_region
        %s1216 = smul.u32 19, %s19
        %p1217 = scmp.lt.s32.totalorder %s1216, 37
        %s1218 = scalar_select %p1217, %s1216, 37
        %s1219 = smul.addr %s1218, 8
        %s1220 = scalar_lea.vmem %s7, %s1219
      $region60: #{discriminator_forward.1} parent=55 // pred_fallthru
        _
    $region56: #{discriminator_forward.1} parent=5 // pred_fallthru
      _
  $region6: #{discriminator_forward.1} parent=0 // loop_footer
    %s17 = sadd.s32 1, %s13
  $region7: #{discriminator_forward.1} parent=0 // loop_footer_branch
    %12 = sbr.rel target = $region3
  $region8: #{discriminator_forward.1} parent=0 // loop_exit
    _

</llo_original>
